<compile_context>
chip_gen: v6e
topology: v6e:2x2x1
jax: 0.10.0
libtpu: 0.0.40
codegen_flags: <defaults>
</compile_context>

<pallas_src>
import jax
import jax.numpy as jnp
from jax.experimental import pallas as pl
from jax.experimental.pallas import tpu as pltpu

_LANES = 128


def global_splash_kernel(pdf_ref, bins_sq_ref, pdfbins_ref, x_ref, o_ref):
    # pdf_ref / bins_sq_ref / pdfbins_ref: (1, 128) f32 VMEM (constant block).
    # x_ref / o_ref: (TN, C) VMEM.
    x = x_ref[...].astype(jnp.float32)

    # Per-row squared L2 norm over the channel (lane) axis.
    sq_norms = jnp.sum(x * x, axis=1, keepdims=True)                 # (TN, 1)

    # Lane-vectorized knot math.  bins_sq is padded with +inf (mask False) and
    # pdf / pdf*bins are padded with 0, so padded lanes contribute nothing.
    mask = sq_norms > bins_sq_ref[...]                               # (TN, 128)
    a = jnp.sum(jnp.where(mask, pdf_ref[...], 0.0),
                axis=-1, keepdims=True)                              # (TN, 1)
    b = jnp.sum(jnp.where(mask, pdfbins_ref[...], 0.0),
                axis=-1, keepdims=True)                              # (TN, 1)

    # Per-element hot path: one broadcast-mul + one broadcast-sub.
    # out = sum_i pdf[i]*(x - bins[i])*m_i  ==  (sum_i pdf[i]*m_i)*x - sum_i pdf[i]*bins[i]*m_i
    o_ref[...] = (a * x - b).astype(o_ref.dtype)


def _vmem_capacity_bytes():
    """Best-effort device VMEM capacity; conservative fallback (v7x per-TC)."""
    try:
        cap = getattr(pltpu.get_tpu_info(), "vmem_capacity_bytes", None)
        if cap:
            return int(cap)
    except Exception:
        pass
    return 64 * 1024 * 1024


def _num_tensorcores():
    """Best-effort TensorCore count per device; fall back to 1 (v5e/v6e)."""
    try:
        d = jax.devices()[0]
        n = getattr(d, "num_cores", None)
        if n:
            return int(n)
    except Exception:
        pass
    return 1


def _pick_row_tile(N, C, itemsize, vmem_limit_bytes, num_cores):
    """Largest sublane-aligned row tile dividing N whose double-buffered x/out
    blocks (2 bufs * 2 arrays * tn * C * itemsize) stay under ~half the VMEM
    limit.  Single-core chips get one big block; multi-core chips keep >= 2
    grid steps per core so each core still pipelines after sharding."""
    sub = max(8, 32 // itemsize)            # f32 -> 8, bf16 -> 16, int8 -> 32
    if N % sub != 0:
        return N                            # tiny / awkward batch: single block
    budget = max(1, vmem_limit_bytes // 2)
    cap = budget // (4 * C * itemsize)      # 2 buffers * 2 arrays
    cap = max(sub, (cap // sub) * sub)
    tn = min(N, cap)
    if num_cores > 1:
        min_steps = 2 * num_cores
        while tn > sub and pl.cdiv(N, tn) < min_steps:
            tn -= sub
    tn = max(sub, (tn // sub) * sub)
    while N % tn != 0:                      # terminates at `sub` since N % sub == 0
        tn -= sub
    return tn


def _pad_to_lanes(v, fill):
    v = jnp.asarray(v, jnp.float32).reshape(-1)
    n = v.shape[0]
    out = jnp.full((_LANES,), fill, dtype=jnp.float32).at[:n].set(v)
    return out.reshape(1, _LANES)


def global_splash_forward(x, pdf, bins, *, tn=None, vmem_limit_bytes=None,
                          num_cores=None):
    N, C = x.shape
    nknots = pdf.shape[0]
    assert nknots <= _LANES, "knot vectors must fit in one lane vector"

    if vmem_limit_bytes is None:
        vmem_limit_bytes = min(64 * 1024 * 1024,
                               max(16 * 1024 * 1024, _vmem_capacity_bytes() // 2))
    if num_cores is None:
        num_cores = _num_tensorcores()

    itemsize = jnp.dtype(x.dtype).itemsize
    if tn is None:
        tn = _pick_row_tile(N, C, itemsize, vmem_limit_bytes, num_cores)
    assert N % tn == 0, "batch dim must be a multiple of the row tile"

    pdf_f32 = jnp.asarray(pdf, jnp.float32)
    bins_f32 = jnp.asarray(bins, jnp.float32)
    pdf_v = _pad_to_lanes(pdf_f32, 0.0)                         # (1, 128)
    bins_sq_v = _pad_to_lanes(bins_f32 * bins_f32, jnp.inf)     # (1, 128)
    pdfbins_v = _pad_to_lanes(pdf_f32 * bins_f32, 0.0)          # (1, 128)

    knot_spec = pl.BlockSpec((1, _LANES), lambda i: (0, 0))     # constant block
    return pl.pallas_call(
        global_splash_kernel,
        out_shape=jax.ShapeDtypeStruct((N, C), x.dtype),
        grid=(N // tn,),
        in_specs=[
            knot_spec,                                  # pdf        (1, 128)
            knot_spec,                                  # bins^2     (1, 128)
            knot_spec,                                  # pdf*bins   (1, 128)
            pl.BlockSpec((tn, C), lambda i: (i, 0)),    # x          (N, C)
        ],
        out_specs=pl.BlockSpec((tn, C), lambda i: (i, 0)),
        compiler_params=pltpu.CompilerParams(
            dimension_semantics=("parallel",),
            vmem_limit_bytes=vmem_limit_bytes),
    )(pdf_v, bins_sq_v, pdfbins_v, x)


def global_splash_reference(x, pdf, bins):
    """Faithful transcription of GlobalSPLASH.forward (per-bin loop, sqrt norm)."""
    norms = jnp.sqrt(jnp.sum(x ** 2, axis=1, keepdims=True))          # (N, 1)
    out = jnp.zeros_like(x)
    for i in range(bins.shape[0]):
        out = out + pdf[i] * (x - bins[i]) * (norms > bins[i]).astype(x.dtype)
    return out


if __name__ == "__main__":
    # GlobalSPLASH(input_shape=C, nknots=10 -> 11, init='random')
    N, C = 128, 256
    nknots = 11                                   # 10 bumped to odd in __init__

    key = jax.random.PRNGKey(0)
    kx, ks, kp = jax.random.split(key, 3)

    x = jax.random.normal(kx, (N, C), dtype=jnp.float32)
    # Spread row norms across the [0, 10] bin range so the masks are exercised.
    x = x * jax.random.uniform(ks, (N, 1), jnp.float32, 0.05, 1.0)

    pdf = jax.random.uniform(kp, (nknots,), jnp.float32, -0.1, 0.1)   # init='random'
    bins = jnp.linspace(0.0, 10.0, nknots).astype(jnp.float32)        # linspace(0, 10, nknots)

    out = global_splash_forward(x, pdf, bins, tn=32)    # explicit 4-step grid
    out = jax.block_until_ready(out)
    out_auto = global_splash_forward(x, pdf, bins)      # auto VMEM-budgeted tile
    out_auto = jax.block_until_ready(out_auto)

    ref = global_splash_reference(x, pdf, bins)
    assert out.shape == x.shape and out.dtype == x.dtype
    assert jnp.allclose(out, ref, atol=1e-4, rtol=1e-5), "mismatch vs reference (tn=32)"
    assert jnp.allclose(out_auto, ref, atol=1e-4, rtol=1e-5), "mismatch vs reference (auto tile)"

    print("KERNEL_OK")
</pallas_src>

<mosaic_0001>
module attributes {stable_mosaic.version = 11 : i64} {
  func.func @global_splash_kernel(%arg0: i32, %arg1: memref<1x128xf32, #tpu.memory_space<vmem>>, %arg2: memref<1x128xf32, #tpu.memory_space<vmem>>, %arg3: memref<1x128xf32, #tpu.memory_space<vmem>>, %arg4: memref<32x256xf32, #tpu.memory_space<vmem>>, %arg5: memref<32x256xf32, #tpu.memory_space<vmem>>) attributes {dimension_semantics = [#tpu.dimension_semantics<parallel>], iteration_bounds = array<i64: 4>, scalar_prefetch = 0 : i64, scratch_operands = 0 : i64, tpu.core_type = #tpu.core_type<tc>, window_params = [{pipeline_mode = #tpu.pipeline_mode<synchronous>, transform_indices = @transform_0, window_bounds = array<i64: 1, 128>}, {pipeline_mode = #tpu.pipeline_mode<synchronous>, transform_indices = @transform_1, window_bounds = array<i64: 1, 128>}, {pipeline_mode = #tpu.pipeline_mode<synchronous>, transform_indices = @transform_2, window_bounds = array<i64: 1, 128>}, {transform_indices = @transform_3, window_bounds = array<i64: 32, 256>}, {transform_indices = @transform_4, window_bounds = array<i64: 32, 256>}]} {
    %c0 = arith.constant 0 : index
    %c0_0 = arith.constant 0 : index
    %0 = vector.load %arg4[%c0, %c0_0] : memref<32x256xf32, #tpu.memory_space<vmem>>, vector<32x256xf32>
    %1 = arith.mulf %0, %0 : vector<32x256xf32>
    %cst = arith.constant dense<0.000000e+00> : vector<32xf32>
    %2 = vector.multi_reduction <add>, %1, %cst [1] : vector<32x256xf32> to vector<32xf32>
    %3 = vector.shape_cast %2 : vector<32xf32> to vector<32x1xf32>
    %c0_1 = arith.constant 0 : index
    %c0_2 = arith.constant 0 : index
    %4 = vector.load %arg2[%c0_1, %c0_2] : memref<1x128xf32, #tpu.memory_space<vmem>>, vector<1x128xf32>
    %5 = vector.broadcast %3 : vector<32x1xf32> to vector<32x128xf32>
    %6 = vector.broadcast %4 : vector<1x128xf32> to vector<32x128xf32>
    %7 = arith.cmpf ogt, %5, %6 : vector<32x128xf32>
    %c0_3 = arith.constant 0 : index
    %c0_4 = arith.constant 0 : index
    %8 = vector.load %arg1[%c0_3, %c0_4] : memref<1x128xf32, #tpu.memory_space<vmem>>, vector<1x128xf32>
    %cst_5 = arith.constant 0.000000e+00 : f32
    %9 = vector.shape_cast %8 : vector<1x128xf32> to vector<1x128xf32>
    %10 = vector.broadcast %9 : vector<1x128xf32> to vector<32x128xf32>
    %11 = vector.broadcast %cst_5 : f32 to vector<32x128xf32>
    %12 = arith.select %7, %10, %11 : vector<32x128xi1>, vector<32x128xf32>
    %cst_6 = arith.constant dense<0.000000e+00> : vector<32xf32>
    %13 = vector.multi_reduction <add>, %12, %cst_6 [1] : vector<32x128xf32> to vector<32xf32>
    %14 = vector.shape_cast %13 : vector<32xf32> to vector<32x1xf32>
    %c0_7 = arith.constant 0 : index
    %c0_8 = arith.constant 0 : index
    %15 = vector.load %arg3[%c0_7, %c0_8] : memref<1x128xf32, #tpu.memory_space<vmem>>, vector<1x128xf32>
    %cst_9 = arith.constant 0.000000e+00 : f32
    %16 = vector.shape_cast %15 : vector<1x128xf32> to vector<1x128xf32>
    %17 = vector.broadcast %16 : vector<1x128xf32> to vector<32x128xf32>
    %18 = vector.broadcast %cst_9 : f32 to vector<32x128xf32>
    %19 = arith.select %7, %17, %18 : vector<32x128xi1>, vector<32x128xf32>
    %cst_10 = arith.constant dense<0.000000e+00> : vector<32xf32>
    %20 = vector.multi_reduction <add>, %19, %cst_10 [1] : vector<32x128xf32> to vector<32xf32>
    %21 = vector.shape_cast %20 : vector<32xf32> to vector<32x1xf32>
    %22 = vector.broadcast %14 : vector<32x1xf32> to vector<32x256xf32>
    %23 = arith.mulf %22, %0 : vector<32x256xf32>
    %24 = vector.broadcast %21 : vector<32x1xf32> to vector<32x256xf32>
    %25 = arith.subf %23, %24 : vector<32x256xf32>
    %c0_11 = arith.constant 0 : index
    %c0_12 = arith.constant 0 : index
    %26 = vector.load %arg5[%c0_11, %c0_12] : memref<32x256xf32, #tpu.memory_space<vmem>>, vector<32x256xf32>
    tpu.vector_store %arg5[%c0_11, %c0_12], %25 {strides = array<i32>} : memref<32x256xf32, #tpu.memory_space<vmem>>, vector<32x256xf32>,
    return
  }
  func.func @transform_0(%arg0: i32) -> (i32, i32) {
    %c0_i32 = arith.constant 0 : i32
    %c0_i32_0 = arith.constant 0 : i32
    %c0_i32_1 = arith.constant 0 : i32
    return %c0_i32, %c0_i32_0 : i32, i32
  }
  func.func @transform_1(%arg0: i32) -> (i32, i32) {
    %c0_i32 = arith.constant 0 : i32
    %c0_i32_0 = arith.constant 0 : i32
    %c0_i32_1 = arith.constant 0 : i32
    return %c0_i32, %c0_i32_0 : i32, i32
  }
  func.func @transform_2(%arg0: i32) -> (i32, i32) {
    %c0_i32 = arith.constant 0 : i32
    %c0_i32_0 = arith.constant 0 : i32
    %c0_i32_1 = arith.constant 0 : i32
    return %c0_i32, %c0_i32_0 : i32, i32
  }
  func.func @transform_3(%arg0: i32) -> (i32, i32) {
    %c0_i32 = arith.constant 0 : i32
    %c0_i32_0 = arith.constant 0 : i32
    return %arg0, %c0_i32 : i32, i32
  }
  func.func @transform_4(%arg0: i32) -> (i32, i32) {
    %c0_i32 = arith.constant 0 : i32
    %c0_i32_0 = arith.constant 0 : i32
    return %arg0, %c0_i32 : i32, i32
  }
}

</mosaic_0001>

<llo_original>
// kernel: tpu_custom_call.1
$region0: #{tpu_custom_call.1}
  #allocation0 [shape = 'u32[]', space=smem, size = 0x4, offset = 0x4, fixed_abs, tag = 'smem constant byte address 0x4 - core index']
  #allocation1 [shape = 'u32[144,128]{1,0:T(1,128)}', space=vmem, size = 0x12000, scoped, tag = 'internal scratch']
  %s0 = inlined_call_operand.hbm [shape: f32[1,128], index: 0, kind: input, shape index: {}]
  %s1 = inlined_call_operand.vmem [shape: f32[1,128], index: 1, kind: input, shape index: {}]
  %s2 = inlined_call_operand.vmem [shape: f32[1,128], index: 2, kind: input, shape index: {}]
  %s3 = inlined_call_operand.hbm [shape: f32[128,256], index: 3, kind: input, shape index: {}]
  %s4 = inlined_call_operand.hbm [shape: f32[128,256], index: 4, kind: output, shape index: {}]
  %s5 = sld [smem:[#allocation0]]
  $region57: #{tpu_custom_call.1} parent=0
    _
  %s7 = ssub.s32 1, %s5
  %s8 = scalar_select 0, %s7, %s5
  $region1: #{tpu_custom_call.1} parent=0
    #allocation2 [shape = 'u8[512]{0}', space=vmem, size = 0x400, scoped, tag = 'input window, operand 0, single buffered']
    #allocation3 [shape = 's32[2]{0}', space=sflag, size = 0x8, scoped, tag = 'scoped memory for tpu_custom_call.1']
    #allocation4 [shape = 's32[2]{0}', space=sflag, size = 0x8, scoped, tag = 'scoped memory for tpu_custom_call.1']
    #allocation5 [shape = 'u8[65536]{0}', space=vmem, size = 0x10000, scoped, tag = 'input window, operand 3']
    #allocation6 [shape = 's32[2]{0}', space=sflag, size = 0x8, scoped, tag = 'scoped memory for tpu_custom_call.1']
    #allocation7 [shape = 'u8[65536]{0}', space=vmem, size = 0x10000, scoped, tag = 'output window, operand 0']
    %9 = vsyncpa [#allocation3], 0
    %10 = vsyncpa [#allocation6], 0
    %s11 = scalar_lea.sflag [#allocation6], 1
    %12 = vsyncpa %s11, 0
    %13 = vsyncpa [#allocation4], 0
    %s14 = scalar_lea.sflag [#allocation4], 1
    %15 = vsyncpa %s14, 0
    loop: start=0, step=1, limit=6
    $region2: #{tpu_custom_call.1} parent=1 // loop_pre_header
      _
    $region3: #{tpu_custom_call.1} parent=1 // loop_header
      %s17 = sphi 0, %s21
      %p18 = scmp.ge.s32.totalorder %s17, 6
      %s25 = sphi 0, %s25
      %s27 = sphi 0, %s25
      %s28 = sphi 0, %s27
      %s42 = sphi 0, %s28
      %s46 = sphi 0, %s46
      %s48 = sphi 0, %s46
      %s49 = sphi 0, %s48
      %s63 = sphi 0, %s49
      %s67 = sphi 0, %s67
      %s69 = sphi 0, %s67
      %s70 = sphi 0, %s69
      %s84 = sphi 0, %s70
      %s90 = sphi 0, %s92
      %s93 = sphi 0, %s90
      %s94 = sphi 0, %s93
      %s110 = sphi 0, %s94
      %s116 = sphi 0, %s118
      %s119 = sphi 0, %s116
      %s120 = sphi 0, %s119
      %s136 = sphi 0, %s120
    $region4: #{tpu_custom_call.1} parent=1 // loop_header_branch
      %20 = sbr.rel (%p18) target = $region8
    $region5: #{tpu_custom_call.1} parent=1 // loop_body
      %s22 = ssub.s32 %s17, 1
      %s23 = ssub.s32 %s17, 2
      %s24 = sadd.s32 %s17, 1
      %s26 = sadd.s32 %s25, 1
      %p29 = scmp.eq.s32.totalorder %s17, 3
      %p30 = scmp.ne.s32.totalorder %s25, %s27
      %p31 = scmp.eq.s32.totalorder %s17, 0
      %p32 = por %p30, %p31
      %p33 = scmp.ne.s32.totalorder %s25, %s27
      %p34 = scmp.eq.s32.totalorder %s22, 3
      %p35 = por %p33, %p34
      %p36 = scmp.ne.s32.totalorder %s27, %s28
      %p37 = scmp.eq.s32.totalorder %s22, 0
      %p38 = por %p36, %p37
      %p39 = scmp.ne.s32.totalorder %s27, %s28
      %p40 = scmp.eq.s32.totalorder %s23, 3
      %p41 = por %p39, %p40
      %p43 = scmp.ne.s32.totalorder %s28, %s42
      %p44 = scmp.eq.s32.totalorder %s23, 0
      %p45 = por %p43, %p44
      %s47 = sadd.s32 %s46, 1
      %p50 = scmp.eq.s32.totalorder %s17, 3
      %p51 = scmp.ne.s32.totalorder %s46, %s48
      %p52 = scmp.eq.s32.totalorder %s17, 0
      %p53 = por %p51, %p52
      %p54 = scmp.ne.s32.totalorder %s46, %s48
      %p55 = scmp.eq.s32.totalorder %s22, 3
      %p56 = por %p54, %p55
      %p57 = scmp.ne.s32.totalorder %s48, %s49
      %p58 = scmp.eq.s32.totalorder %s22, 0
      %p59 = por %p57, %p58
      %p60 = scmp.ne.s32.totalorder %s48, %s49
      %p61 = scmp.eq.s32.totalorder %s23, 3
      %p62 = por %p60, %p61
      %p64 = scmp.ne.s32.totalorder %s49, %s63
      %p65 = scmp.eq.s32.totalorder %s23, 0
      %p66 = por %p64, %p65
      %s68 = sadd.s32 %s67, 1
      %p71 = scmp.eq.s32.totalorder %s17, 3
      %p72 = scmp.ne.s32.totalorder %s67, %s69
      %p73 = scmp.eq.s32.totalorder %s17, 0
      %p74 = por %p72, %p73
      %p75 = scmp.ne.s32.totalorder %s67, %s69
      %p76 = scmp.eq.s32.totalorder %s22, 3
      %p77 = por %p75, %p76
      %p78 = scmp.ne.s32.totalorder %s69, %s70
      %p79 = scmp.eq.s32.totalorder %s22, 0
      %p80 = por %p78, %p79
      %p81 = scmp.ne.s32.totalorder %s69, %s70
      %p82 = scmp.eq.s32.totalorder %s23, 3
      %p83 = por %p81, %p82
      %p85 = scmp.ne.s32.totalorder %s70, %s84
      %p86 = scmp.eq.s32.totalorder %s23, 0
      %p87 = por %p85, %p86
      %s88 = ssub.s32 %s17, %s24
      %p89 = scmp.eq.s32.totalorder %s88, 0
      %s91 = sadd.s32 %s90, 1
      %s92 = scalar_select %p89, %s90, %s91
      %p95 = pneg %p89
      %p96 = scmp.eq.s32.totalorder %s17, 3
      %p97 = por %p95, %p96
      %p98 = scmp.ne.s32.totalorder %s90, %s93
      %p99 = scmp.eq.s32.totalorder %s17, 0
      %p100 = por %p98, %p99
      %p101 = scmp.ne.s32.totalorder %s90, %s93
      %p102 = scmp.eq.s32.totalorder %s22, 3
      %p103 = por %p101, %p102
      %p104 = scmp.ne.s32.totalorder %s93, %s94
      %p105 = scmp.eq.s32.totalorder %s22, 0
      %p106 = por %p104, %p105
      %p107 = scmp.ne.s32.totalorder %s93, %s94
      %p108 = scmp.eq.s32.totalorder %s23, 3
      %p109 = por %p107, %p108
      %p111 = scmp.ne.s32.totalorder %s94, %s110
      %p112 = scmp.eq.s32.totalorder %s23, 0
      %p113 = por %p111, %p112
      %s114 = ssub.s32 %s17, %s24
      %p115 = scmp.eq.s32.totalorder %s114, 0
      %s117 = sadd.s32 %s116, 1
      %s118 = scalar_select %p115, %s116, %s117
      %p121 = pneg %p115
      %p122 = scmp.eq.s32.totalorder %s17, 3
      %p123 = por %p121, %p122
      %p124 = scmp.ne.s32.totalorder %s116, %s119
      %p125 = scmp.eq.s32.totalorder %s17, 0
      %p126 = por %p124, %p125
      %p127 = scmp.ne.s32.totalorder %s116, %s119
      %p128 = scmp.eq.s32.totalorder %s22, 3
      %p129 = por %p127, %p128
      %p130 = scmp.ne.s32.totalorder %s119, %s120
      %p131 = scmp.eq.s32.totalorder %s22, 0
      %p132 = por %p130, %p131
      %p133 = scmp.ne.s32.totalorder %s119, %s120
      %p134 = scmp.eq.s32.totalorder %s23, 3
      %p135 = por %p133, %p134
      %p137 = scmp.ne.s32.totalorder %s120, %s136
      %p138 = scmp.eq.s32.totalorder %s23, 0
      %p139 = por %p137, %p138
      %p140 = scmp.le.s32.totalorder 1, %s17
      %p141 = scmp.lt.s32.totalorder %s17, 5
      %p142 = pnand %p140, %p141
      %p143 = pneg %p142
      // Predicated region
      $region9: #{tpu_custom_call.1} parent=5 // pred_check
        _
      $region10: #{tpu_custom_call.1} parent=5 // pred_check_branch
        %145 = sbr.rel (%p142) target = $region12
      $region11: #{tpu_custom_call.1} parent=5 // pred_region
        %s146 = ssub.s32 %s17, 1
        // Predicated region
        $region13: #{tpu_custom_call.1} parent=11 // pred_check
          %p147 = pneg %p38
        $region14: #{tpu_custom_call.1} parent=11 // pred_check_branch
          %149 = sbr.rel (%p147) target = $region16
        $region15: #{tpu_custom_call.1} parent=11 // pred_region
          %s151 = ssub.s32 16, 16
          %152 = vsyncadd [#allocation3], %s151
          %s154 = sshll.u32 [#allocation2], 4
          %s155 = int_to_ptr.vmem [resolvable:$true] %s154
          %157 = dma.hbm_to_vmem [thread:$0]  %s0, 16, %s155, [#allocation3]
        $region16: #{tpu_custom_call.1} parent=11 // pred_fallthru
          _
        // Predicated region
        $region17: #{tpu_custom_call.1} parent=11 // pred_check
          %p158 = pneg %p59
        $region18: #{tpu_custom_call.1} parent=11 // pred_check_branch
          %160 = sbr.rel (%p158) target = $region20
        $region19: #{tpu_custom_call.1} parent=11 // pred_region
          _
        $region20: #{tpu_custom_call.1} parent=11 // pred_fallthru
          _
        // Predicated region
        $region21: #{tpu_custom_call.1} parent=11 // pred_check
          %p161 = pneg %p80
        $region22: #{tpu_custom_call.1} parent=11 // pred_check_branch
          %163 = sbr.rel (%p161) target = $region24
        $region23: #{tpu_custom_call.1} parent=11 // pred_region
          _
        $region24: #{tpu_custom_call.1} parent=11 // pred_fallthru
          _
      $region12: #{tpu_custom_call.1} parent=5 // pred_fallthru
        _
      %p164 = scmp.lt.s32.totalorder %s17, 4
      // Predicated region
      $region25: #{tpu_custom_call.1} parent=5 // pred_check
        %p165 = pneg %p164
      $region26: #{tpu_custom_call.1} parent=5 // pred_check_branch
        %167 = sbr.rel (%p165) target = $region28
      $region27: #{tpu_custom_call.1} parent=5 // pred_region
        // Predicated region
        $region29: #{tpu_custom_call.1} parent=27 // pred_check
          %p168 = pneg %p100
        $region30: #{tpu_custom_call.1} parent=27 // pred_check_branch
          %170 = sbr.rel (%p168) target = $region32
        $region31: #{tpu_custom_call.1} parent=27 // pred_region
          %s171 = sand.u32 %s90, 1
          %s172 = scalar_lea.sflag [#allocation6], %s171
          %s173 = sand.u32 %s90, 1
          %s174 = smul.addr %s173, 64
          %s175 = scalar_lea.vmem [#allocation5], %s174
          %s176 = smul.u32 4, %s17
          %s178 = ssub.s32 1024, 1024
          %179 = vsyncadd %s172, %s178
          %s180 = smul.addr %s176, 2
          %s181 = smul.addr %s180, 128
          %s182 = scalar_lea.hbm %s3, %s181
          %s183 = sshll.u32 %s175, 4
          %s184 = int_to_ptr.vmem [resolvable:$true] %s183
          %189 = dma.hbm_to_vmem [thread:$0]  %s182, 1024, %s184, %s172, 256, 256, 16
        $region32: #{tpu_custom_call.1} parent=27 // pred_fallthru
          _
      $region28: #{tpu_custom_call.1} parent=5 // pred_fallthru
        _
      %p190 = scmp.le.s32.totalorder 1, %s17
      %p191 = scmp.lt.s32.totalorder %s17, 5
      %p192 = pnand %p190, %p191
      %p193 = pneg %p192
      // Predicated region
      $region33: #{tpu_custom_call.1} parent=5 // pred_check
        _
      $region34: #{tpu_custom_call.1} parent=5 // pred_check_branch
        %195 = sbr.rel (%p192) target = $region36
      $region35: #{tpu_custom_call.1} parent=5 // pred_region
        %s196 = ssub.s32 %s17, 1
        // Predicated region
        $region37: #{tpu_custom_call.1} parent=35 // pred_check
          %p197 = pneg %p38
        $region38: #{tpu_custom_call.1} parent=35 // pred_check_branch
          %199 = sbr.rel (%p197) target = $region40
        $region39: #{tpu_custom_call.1} parent=35 // pred_region
          %200 = dma.done [#allocation3], 16
        $region40: #{tpu_custom_call.1} parent=35 // pred_fallthru
          _
        %s201 = sand.u32 %s93, 1
        %s202 = scalar_lea.sflag [#allocation6], %s201
        %s203 = sand.u32 %s93, 1
        %s204 = smul.addr %s203, 64
        %s205 = scalar_lea.vmem [#allocation5], %s204
        // Predicated region
        $region41: #{tpu_custom_call.1} parent=35 // pred_check
          %p206 = pneg %p106
        $region42: #{tpu_custom_call.1} parent=35 // pred_check_branch
          %208 = sbr.rel (%p206) target = $region44
        $region43: #{tpu_custom_call.1} parent=35 // pred_region
          %209 = dma.done %s202, 1024
        $region44: #{tpu_custom_call.1} parent=35 // pred_fallthru
          _
        %p210 = pneg %p38
        %p211 = pneg %p35
        %p212 = pneg %p59
        %p213 = pneg %p56
        %p214 = pneg %p80
        %p215 = pneg %p77
        %s216 = sand.u32 %s93, 1
        %s217 = scalar_lea.sflag [#allocation6], %s216
        %s218 = sand.u32 %s93, 1
        %s219 = smul.addr %s218, 64
        %s220 = scalar_lea.vmem [#allocation5], %s219
        %p221 = pneg %p106
        %p222 = pneg %p103
        %p223 = pneg %p132
        %p224 = pneg %p129
        %s225 = sand.u32 %s119, 1
        %s226 = scalar_lea.sflag [#allocation4], %s225
        %s227 = sand.u32 %s119, 1
        %s228 = smul.addr %s227, 64
        %s229 = scalar_lea.vmem [#allocation7], %s228
        %s230 = smul.u32 4, %s22
        %s231 = smul.u32 4, %s22
        %v232 = vld [vmem:[%s205] sm:$0xff]
        %v233 = vld [vmem:[%s205 + $0x8] sm:$0xff]
        %v234 = vld [vmem:[%s205 + $0x10] sm:$0xff]
        %v235 = vld [vmem:[%s205 + $0x18] sm:$0xff]
        %v236 = vld [vmem:[%s205 + $0x20] sm:$0xff]
        %v237 = vld [vmem:[%s205 + $0x28] sm:$0xff]
        %v238 = vld [vmem:[%s205 + $0x30] sm:$0xff]
        %v239 = vld [vmem:[%s205 + $0x38] sm:$0xff]
        %v240 = vmul.f32 %v232, %v232
        %v241 = vmul.f32 %v233, %v233
        %v242 = vmul.f32 %v234, %v234
        %v243 = vmul.f32 %v235, %v235
        %v244 = vmul.f32 %v236, %v236
        %v245 = vmul.f32 %v237, %v237
        %v246 = vmul.f32 %v238, %v238
        %v247 = vmul.f32 %v239, %v239
        %v248 = vadd.f32 %v240, %v241
        %249 = vadd.xlane.f32.xlu0 %v248
        %v250 = vpop.xlane.xlu0 %249
        %v251 = vadd.f32 %v242, %v243
        %252 = vadd.xlane.f32.xlu0 %v251
        %v253 = vpop.xlane.xlu0 %252
        %v254 = vadd.f32 %v244, %v245
        %255 = vadd.xlane.f32.xlu0 %v254
        %v256 = vpop.xlane.xlu0 %255
        %v257 = vadd.f32 %v246, %v247
        %258 = vadd.xlane.f32.xlu0 %v257
        %v259 = vpop.xlane.xlu0 %258
        %v260 = vld [vmem:[%s1] sm:$0x1]
        %v262 = vlaneseq
        %v263 = vshrl.u32 %v262, 7
        %v264 = vsub.s32 0, %v263
        %v265 = vrot.slane %v260, %v264
        %vm267 = vcmp.gt.f32.partialorder %v250, %v265
        %vm268 = vcmp.gt.f32.partialorder %v253, %v265
        %vm269 = vcmp.gt.f32.partialorder %v256, %v265
        %vm270 = vcmp.gt.f32.partialorder %v259, %v265
        %v271 = vld [vmem:[#allocation2] sm:$0x1]
        %v273 = vlaneseq
        %v274 = vshrl.u32 %v273, 7
        %v275 = vsub.s32 0, %v274
        %v276 = vrot.slane %v271, %v275
        %v278 = vsel %vm267, %v276, 0.0
        %v279 = vsel %vm268, %v276, 0.0
        %v280 = vsel %vm269, %v276, 0.0
        %v281 = vsel %vm270, %v276, 0.0
        %282 = vadd.xlane.f32.xlu0 %v278
        %v283 = vpop.xlane.xlu0 %282
        %284 = vadd.xlane.f32.xlu0 %v279
        %v285 = vpop.xlane.xlu0 %284
        %286 = vadd.xlane.f32.xlu0 %v280
        %v287 = vpop.xlane.xlu0 %286
        %288 = vadd.xlane.f32.xlu0 %v281
        %v289 = vpop.xlane.xlu0 %288
        %v290 = vld [vmem:[%s2] sm:$0x1]
        %v292 = vlaneseq
        %v293 = vshrl.u32 %v292, 7
        %v294 = vsub.s32 0, %v293
        %v295 = vrot.slane %v290, %v294
        %v297 = vsel %vm267, %v295, 0.0
        %v298 = vsel %vm268, %v295, 0.0
        %v299 = vsel %vm269, %v295, 0.0
        %v300 = vsel %vm270, %v295, 0.0
        %301 = vadd.xlane.f32.xlu0 %v297
        %v302 = vpop.xlane.xlu0 %301
        %303 = vadd.xlane.f32.xlu0 %v298
        %v304 = vpop.xlane.xlu0 %303
        %305 = vadd.xlane.f32.xlu0 %v299
        %v306 = vpop.xlane.xlu0 %305
        %307 = vadd.xlane.f32.xlu0 %v300
        %v308 = vpop.xlane.xlu0 %307
        %v309 = vmul.f32 %v283, %v232
        %v310 = vmul.f32 %v283, %v233
        %v311 = vmul.f32 %v285, %v234
        %v312 = vmul.f32 %v285, %v235
        %v313 = vmul.f32 %v287, %v236
        %v314 = vmul.f32 %v287, %v237
        %v315 = vmul.f32 %v289, %v238
        %v316 = vmul.f32 %v289, %v239
        %v317 = vsub.f32 %v309, %v302
        %v318 = vsub.f32 %v310, %v302
        %v319 = vsub.f32 %v311, %v304
        %v320 = vsub.f32 %v312, %v304
        %v321 = vsub.f32 %v313, %v306
        %v322 = vsub.f32 %v314, %v306
        %v323 = vsub.f32 %v315, %v308
        %v324 = vsub.f32 %v316, %v308
        %325 = vst [vmem:[%s229] sm:$0xff] %v317
        %326 = vst [vmem:[%s229 + $0x8] sm:$0xff] %v318
        %327 = vst [vmem:[%s229 + $0x10] sm:$0xff] %v319
        %328 = vst [vmem:[%s229 + $0x18] sm:$0xff] %v320
        %329 = vst [vmem:[%s229 + $0x20] sm:$0xff] %v321
        %330 = vst [vmem:[%s229 + $0x28] sm:$0xff] %v322
        %331 = vst [vmem:[%s229 + $0x30] sm:$0xff] %v323
        %332 = vst [vmem:[%s229 + $0x38] sm:$0xff] %v324
        %s333 = sand.u32 %s119, 1
        %s334 = scalar_lea.sflag [#allocation4], %s333
        %s335 = sand.u32 %s119, 1
        %s336 = smul.addr %s335, 64
        %s337 = scalar_lea.vmem [#allocation7], %s336
        // Predicated region
        $region45: #{tpu_custom_call.1} parent=35 // pred_check
          %p338 = pneg %p129
        $region46: #{tpu_custom_call.1} parent=35 // pred_check_branch
          %340 = sbr.rel (%p338) target = $region48
        $region47: #{tpu_custom_call.1} parent=35 // pred_region
          %s341 = smul.u32 4, %s22
          %s343 = ssub.s32 1024, 1024
          %344 = vsyncadd %s334, %s343
          %s345 = smul.addr %s341, 2
          %s346 = smul.addr %s345, 128
          %s347 = scalar_lea.hbm %s4, %s346
          %s348 = sshll.u32 %s337, 4
          %s349 = int_to_ptr.vmem [resolvable:$true] %s348
          %354 = dma.vmem_to_hbm [thread:$0]  %s349, 1024, %s347, %s334, 256, 256, 16
        $region48: #{tpu_custom_call.1} parent=35 // pred_fallthru
          _
      $region36: #{tpu_custom_call.1} parent=5 // pred_fallthru
        _
      %p355 = scmp.le.s32.totalorder 2, %s17
      // Predicated region
      $region49: #{tpu_custom_call.1} parent=5 // pred_check
        %p356 = pneg %p355
      $region50: #{tpu_custom_call.1} parent=5 // pred_check_branch
        %358 = sbr.rel (%p356) target = $region52
      $region51: #{tpu_custom_call.1} parent=5 // pred_region
        %s359 = ssub.s32 %s17, 2
        // Predicated region
        $region53: #{tpu_custom_call.1} parent=51 // pred_check
          %p360 = pneg %p135
        $region54: #{tpu_custom_call.1} parent=51 // pred_check_branch
          %362 = sbr.rel (%p360) target = $region56
        $region55: #{tpu_custom_call.1} parent=51 // pred_region
          %s363 = sand.u32 %s120, 1
          %s364 = scalar_lea.sflag [#allocation4], %s363
          %s365 = sand.u32 %s120, 1
          %s366 = smul.addr %s365, 64
          %s367 = scalar_lea.vmem [#allocation7], %s366
          %368 = dma.done %s364, 1024
        $region56: #{tpu_custom_call.1} parent=51 // pred_fallthru
          _
      $region52: #{tpu_custom_call.1} parent=5 // pred_fallthru
        _
    $region6: #{tpu_custom_call.1} parent=1 // loop_footer
      %s21 = sadd.s32 1, %s17
    $region7: #{tpu_custom_call.1} parent=1 // loop_footer_branch
      %16 = sbr.rel target = $region3
    $region8: #{tpu_custom_call.1} parent=1 // loop_exit
      _
    %369 = vsyncpa [#allocation3], 1
    %s370 = scalar_lea.sflag [#allocation3], 1
    %371 = vsyncpa %s370, 1
    %372 = vsyncpa [#allocation6], 1
    %s373 = scalar_lea.sflag [#allocation6], 1
    %374 = vsyncpa %s373, 1
    %375 = vsyncpa [#allocation4], 1
    %s376 = scalar_lea.sflag [#allocation4], 1
    %377 = vsyncpa %s376, 1

</llo_original>
